<compile_context>
chip_gen: v7x
topology: tpu7x:2x2x1
jax: 0.10.0
libtpu: 0.0.40
codegen_flags: <defaults>
</compile_context>

<pallas_src>
import functools

import jax
import jax.numpy as jnp
from jax.experimental import pallas as pl
from jax.experimental.pallas import tpu as pltpu

_LANE = 128          # TPU lane width; hidden/head widths padded to this
_HEAD_PAD = _LANE    # fused actor+critic head output width


def _elementwise_dtype():
    """bf16 elementwise chain on v6e/v7x (bf16 VPU); f32 elsewhere (e.g. v5e)."""
    try:
        kind = jax.devices()[0].device_kind.lower()
    except Exception:  # pragma: no cover - defensive
        return jnp.float32
    if "v6" in kind or "v7" in kind:
        return jnp.bfloat16
    return jnp.float32


# ----------------------------------------------------------------------------
# Pallas kernel: whole MLP fused; weights come in as ONE packed bf16 slab and
# ONE f32 bias slab, carved with static tile-aligned slices.
# Weight slab layout (rows, all offsets multiples of 16 for bf16 tiling):
#   [0            , np16      ) x [0:128] : W1  (num_inputs -> 128-padded 64)
#   [np16         , np16 + 128) x [0:128] : W2  (128-padded 64 -> 128-padded 64)
#   [np16 + 128   , np16 + 256) x [0:256] : W3  (128-padded 64 -> 256)
#   [np16 + 256   , np16 + 512) x [0:128] : Wh  (256 -> fused actor|critic, 128-padded)
# Bias slab rows: 0 -> b1, 1 -> b2, 2 -> b3, 3 -> bh (all zero-initialized).
# ----------------------------------------------------------------------------
def _actor_critic_kernel(np16, act_dtype, x_ref, w_ref, b_ref, out_ref):
    rw2 = np16
    rw3 = np16 + 128
    rwh = np16 + 256

    biases = b_ref[...]                               # [8, 256] f32
    b1 = biases[0:1, 0:128].astype(act_dtype)
    b2 = biases[1:2, 0:128].astype(act_dtype)
    b3 = biases[2:3, 0:256].astype(act_dtype)
    bh = biases[3:4, 0:128]                           # head bias-add stays f32

    x = x_ref[...].astype(jnp.bfloat16)               # MXU input

    # linear_1 + ReLU
    h = jnp.dot(x, w_ref[0:np16, 0:128], preferred_element_type=act_dtype) + b1
    h = jnp.maximum(h, 0.0).astype(jnp.bfloat16)

    # linear_2 + ReLU (dropout = identity in eval mode)
    h = jnp.dot(h, w_ref[rw2:rw3, 0:128], preferred_element_type=act_dtype) + b2
    h = jnp.maximum(h, 0.0).astype(jnp.bfloat16)

    # linear_3 + ReLU (dropout = identity in eval mode)
    h = jnp.dot(h, w_ref[rw3:rwh, 0:256], preferred_element_type=act_dtype) + b3
    h = jnp.maximum(h, 0.0).astype(jnp.bfloat16)

    # Fused actor+critic heads: one matmul, one lane-dense [B, 128] f32 store.
    out_ref[...] = jnp.dot(h, w_ref[rwh:rwh + 256, 0:128],
                           preferred_element_type=jnp.float32) + bh


@functools.partial(jax.jit, static_argnames=("num_actions", "batch_tile"))
def actor_critic_forward(x, hx, cx, w_slab, b_slab, *, num_actions, batch_tile=256):
    """Pallas-backed forward. Returns (actor, critic, hx, cx) like the torch module."""
    batch = x.shape[0]
    np16 = w_slab.shape[0] - 512
    if x.shape[1] != np16:                      # pad features to the packed K dim
        x = jnp.pad(x, ((0, 0), (0, np16 - x.shape[1])))

    act_dtype = _elementwise_dtype()
    kernel = functools.partial(_actor_critic_kernel, np16, act_dtype)

    # Advisory cost estimate so XLA can schedule this small custom call.
    flops = 2 * batch * (np16 * 128 + 128 * 128 + 128 * 256 + 256 * _HEAD_PAD)
    bytes_accessed = (x.size * x.dtype.itemsize
                      + w_slab.size * w_slab.dtype.itemsize
                      + b_slab.size * b_slab.dtype.itemsize
                      + batch * _HEAD_PAD * 4)
    cost = pl.CostEstimate(flops=flops, transcendentals=0,
                           bytes_accessed=bytes_accessed)

    out_shape = jax.ShapeDtypeStruct((batch, _HEAD_PAD), jnp.float32)

    if batch % batch_tile == 0 and batch >= 2 * batch_tile:
        # Scale-up path: batch-tiled parallel grid (both TCs on v7x); weights
        # and biases stay resident via constant index_map.
        grid_spec = pltpu.PrefetchScalarGridSpec(
            num_scalar_prefetch=0,
            grid=(batch // batch_tile,),
            in_specs=[
                pl.BlockSpec((batch_tile, np16), lambda i: (i, 0)),
                pl.BlockSpec(w_slab.shape, lambda i: (0, 0)),
                pl.BlockSpec(b_slab.shape, lambda i: (0, 0)),
            ],
            out_specs=pl.BlockSpec((batch_tile, _HEAD_PAD), lambda i: (i, 0)),
        )
        heads = pl.pallas_call(
            kernel,
            out_shape=out_shape,
            grid_spec=grid_spec,
            compiler_params=pltpu.CompilerParams(
                dimension_semantics=("parallel",)),
            cost_estimate=cost,
        )(x, w_slab, b_slab)
    else:
        # Latency path: grid-less call, everything VMEM-resident, 3 input DMAs.
        vmem = pl.BlockSpec(memory_space=pltpu.MemorySpace.VMEM)
        heads = pl.pallas_call(
            kernel,
            out_shape=out_shape,
            in_specs=[vmem, vmem, vmem],
            out_specs=vmem,
            cost_estimate=cost,
        )(x, w_slab, b_slab)

    actor = heads[:, :num_actions]
    critic = heads[:, num_actions:num_actions + 1]
    return actor, critic, hx, cx


# ----------------------------------------------------------------------------
# Deterministic parameter initialization (xavier_uniform_ weights, zero bias),
# matching SimpleActorCriticLineal._initialize_weights(), packed into one bf16
# weight slab (stored transposed, [fan_in, fan_out]) and one f32 bias slab.
# NOTE: converting a real torch checkpoint must reproduce exactly this packing.
# ----------------------------------------------------------------------------
def _xavier_uniform(key, fan_in, fan_out):
    bound = jnp.sqrt(6.0 / (fan_in + fan_out))
    return jax.random.uniform(key, (fan_in, fan_out), dtype=jnp.float32,
                              minval=-bound, maxval=bound)


def init_params(key, num_inputs, num_actions):
    assert num_actions + 1 <= _HEAD_PAD, "fused head assumes num_actions+1 <= 128"
    np16 = 16 * pl.cdiv(num_inputs, 16)           # bf16 sublane-tile aligned K
    k1, k2, k3, ka, kc = jax.random.split(key, 5)

    w1 = _xavier_uniform(k1, num_inputs, 64)      # linear_1
    w2 = _xavier_uniform(k2, 64, 64)              # linear_2
    w3 = _xavier_uniform(k3, 64, 256)             # linear_3
    wa = _xavier_uniform(ka, 256, num_actions)    # actor_linear
    wc = _xavier_uniform(kc, 256, 1)              # critic_linear

    rw2, rw3, rwh = np16, np16 + 128, np16 + 256
    slab = jnp.zeros((np16 + 512, 256), jnp.float32)
    slab = slab.at[0:num_inputs, 0:64].set(w1)
    slab = slab.at[rw2:rw2 + 64, 0:64].set(w2)
    slab = slab.at[rw3:rw3 + 64, 0:256].set(w3)
    slab = slab.at[rwh:rwh + 256, 0:num_actions].set(wa)
    slab = slab.at[rwh:rwh + 256, num_actions:num_actions + 1].set(wc)
    w_slab = slab.astype(jnp.bfloat16)

    b_slab = jnp.zeros((8, 256), jnp.float32)     # all biases initialized to 0
    return w_slab, b_slab


# ----------------------------------------------------------------------------
# Reference in plain JAX, mirroring the kernel's dtype chain exactly.
# ----------------------------------------------------------------------------
def reference_forward(x, w_slab, b_slab, *, num_actions, act_dtype):
    np16 = w_slab.shape[0] - 512
    if x.shape[1] != np16:
        x = jnp.pad(x, ((0, 0), (0, np16 - x.shape[1])))
    rw2, rw3, rwh = np16, np16 + 128, np16 + 256
    b1 = b_slab[0:1, 0:128].astype(act_dtype)
    b2 = b_slab[1:2, 0:128].astype(act_dtype)
    b3 = b_slab[2:3, 0:256].astype(act_dtype)
    bh = b_slab[3:4, 0:128]

    h = jnp.dot(x.astype(jnp.bfloat16), w_slab[0:np16, 0:128],
                preferred_element_type=act_dtype) + b1
    h = jnp.maximum(h, 0.0).astype(jnp.bfloat16)
    h = jnp.dot(h, w_slab[rw2:rw3, 0:128], preferred_element_type=act_dtype) + b2
    h = jnp.maximum(h, 0.0).astype(jnp.bfloat16)
    h = jnp.dot(h, w_slab[rw3:rwh, 0:256], preferred_element_type=act_dtype) + b3
    h = jnp.maximum(h, 0.0).astype(jnp.bfloat16)
    heads = jnp.dot(h, w_slab[rwh:rwh + 256, 0:128],
                    preferred_element_type=jnp.float32) + bh
    return heads[:, :num_actions], heads[:, num_actions:num_actions + 1]


if __name__ == "__main__":
    num_inputs = 32
    num_actions = 6
    hidden_lstm = 64     # hx/cx are just passed through untouched

    key = jax.random.PRNGKey(0)
    k_param, k_data = jax.random.split(key)
    w_slab, b_slab = init_params(k_param, num_inputs, num_actions)
    act_dtype = _elementwise_dtype()

    def run_and_check(batch):
        kx, kh, kc = jax.random.split(jax.random.fold_in(k_data, batch), 3)
        x = jax.random.normal(kx, (batch, num_inputs), dtype=jnp.float32)
        hx = jax.random.normal(kh, (batch, hidden_lstm), dtype=jnp.float32)
        cx = jax.random.normal(kc, (batch, hidden_lstm), dtype=jnp.float32)

        actor, critic, hx_out, cx_out = actor_critic_forward(
            x, hx, cx, w_slab, b_slab, num_actions=num_actions)
        jax.block_until_ready((actor, critic, hx_out, cx_out))

        a_ref, c_ref = reference_forward(x, w_slab, b_slab,
                                         num_actions=num_actions,
                                         act_dtype=act_dtype)
        assert actor.shape == (batch, num_actions)
        assert critic.shape == (batch, 1)
        assert jnp.allclose(actor, a_ref, atol=1e-2, rtol=1e-2)
        assert jnp.allclose(critic, c_ref, atol=1e-2, rtol=1e-2)
        assert jnp.array_equal(hx_out, hx) and jnp.array_equal(cx_out, cx)

    run_and_check(8)      # small batch: grid-less, fully VMEM-resident call
    run_and_check(1024)   # large batch: batch-tiled parallel grid path
    print("KERNEL_OK")
</pallas_src>

<mosaic_0001>
module attributes {stable_mosaic.version = 11 : i64} {
  func.func @_actor_critic_kernel(%arg0: memref<8x32xf32, #tpu.memory_space<vmem>>, %arg1: memref<544x256xbf16, #tpu.memory_space<vmem>>, %arg2: memref<8x256xf32, #tpu.memory_space<vmem>>, %arg3: memref<8x128xf32, #tpu.memory_space<vmem>>) attributes {dimension_semantics = [], scalar_prefetch = 0 : i64, scratch_operands = 0 : i64, tpu.core_type = #tpu.core_type<tc>} {
    %c0 = arith.constant 0 : index
    %c0_0 = arith.constant 0 : index
    %0 = vector.load %arg2[%c0, %c0_0] : memref<8x256xf32, #tpu.memory_space<vmem>>, vector<8x256xf32>
    %1 = vector.extract_strided_slice %0 {offsets = [0, 0], sizes = [1, 128], strides = [1, 1]} : vector<8x256xf32> to vector<1x128xf32>
    %2 = vector.extract_strided_slice %0 {offsets = [1, 0], sizes = [1, 128], strides = [1, 1]} : vector<8x256xf32> to vector<1x128xf32>
    %3 = vector.extract_strided_slice %0 {offsets = [2, 0], sizes = [1, 256], strides = [1, 1]} : vector<8x256xf32> to vector<1x256xf32>
    %4 = vector.extract_strided_slice %0 {offsets = [3, 0], sizes = [1, 128], strides = [1, 1]} : vector<8x256xf32> to vector<1x128xf32>
    %c0_1 = arith.constant 0 : index
    %c0_2 = arith.constant 0 : index
    %5 = vector.load %arg0[%c0_1, %c0_2] : memref<8x32xf32, #tpu.memory_space<vmem>>, vector<8x32xf32>
    %6 = arith.truncf %5 : vector<8x32xf32> to vector<8x32xbf16>
    %c0_3 = arith.constant 0 : index
    %c0_4 = arith.constant 0 : index
    %7 = vector.load %arg1[%c0_3, %c0_4] : memref<544x256xbf16, #tpu.memory_space<vmem>>, vector<32x128xbf16>
    %cst = arith.constant dense<0.000000e+00> : vector<8x128xf32>
    %8 = tpu.matmul %6, %7, %cst {dimension_numbers = #tpu.dot_dimension_numbers<[1], [0], [0], [1], [0, 0, 1, 1], [], []>} : vector<8x32xbf16>, vector<32x128xbf16>, vector<8x128xf32> -> vector<8x128xf32>
    %9 = vector.broadcast %1 : vector<1x128xf32> to vector<8x128xf32>
    %10 = arith.addf %8, %9 : vector<8x128xf32>
    %cst_5 = arith.constant 0.000000e+00 : f32
    %11 = vector.broadcast %cst_5 : f32 to vector<8x128xf32>
    %12 = arith.maximumf %10, %11 : vector<8x128xf32>
    %13 = arith.truncf %12 : vector<8x128xf32> to vector<8x128xbf16>
    %c32 = arith.constant 32 : index
    %c0_6 = arith.constant 0 : index
    %14 = vector.load %arg1[%c32, %c0_6] : memref<544x256xbf16, #tpu.memory_space<vmem>>, vector<128x128xbf16>
    %cst_7 = arith.constant dense<0.000000e+00> : vector<8x128xf32>
    %15 = tpu.matmul %13, %14, %cst_7 {dimension_numbers = #tpu.dot_dimension_numbers<[1], [0], [0], [1], [0, 0, 1, 1], [], []>} : vector<8x128xbf16>, vector<128x128xbf16>, vector<8x128xf32> -> vector<8x128xf32>
    %16 = vector.broadcast %2 : vector<1x128xf32> to vector<8x128xf32>
    %17 = arith.addf %15, %16 : vector<8x128xf32>
    %cst_8 = arith.constant 0.000000e+00 : f32
    %18 = vector.broadcast %cst_8 : f32 to vector<8x128xf32>
    %19 = arith.maximumf %17, %18 : vector<8x128xf32>
    %20 = arith.truncf %19 : vector<8x128xf32> to vector<8x128xbf16>
    %c160 = arith.constant 160 : index
    %c0_9 = arith.constant 0 : index
    %21 = vector.load %arg1[%c160, %c0_9] : memref<544x256xbf16, #tpu.memory_space<vmem>>, vector<128x256xbf16>
    %cst_10 = arith.constant dense<0.000000e+00> : vector<8x256xf32>
    %22 = tpu.matmul %20, %21, %cst_10 {dimension_numbers = #tpu.dot_dimension_numbers<[1], [0], [0], [1], [0, 0, 1, 1], [], []>} : vector<8x128xbf16>, vector<128x256xbf16>, vector<8x256xf32> -> vector<8x256xf32>
    %23 = vector.broadcast %3 : vector<1x256xf32> to vector<8x256xf32>
    %24 = arith.addf %22, %23 : vector<8x256xf32>
    %cst_11 = arith.constant 0.000000e+00 : f32
    %25 = vector.broadcast %cst_11 : f32 to vector<8x256xf32>
    %26 = arith.maximumf %24, %25 : vector<8x256xf32>
    %27 = arith.truncf %26 : vector<8x256xf32> to vector<8x256xbf16>
    %c288 = arith.constant 288 : index
    %c0_12 = arith.constant 0 : index
    %28 = vector.load %arg1[%c288, %c0_12] : memref<544x256xbf16, #tpu.memory_space<vmem>>, vector<256x128xbf16>
    %cst_13 = arith.constant dense<0.000000e+00> : vector<8x128xf32>
    %29 = tpu.matmul %27, %28, %cst_13 {dimension_numbers = #tpu.dot_dimension_numbers<[1], [0], [0], [1], [0, 0, 1, 1], [], []>} : vector<8x256xbf16>, vector<256x128xbf16>, vector<8x128xf32> -> vector<8x128xf32>
    %30 = vector.broadcast %4 : vector<1x128xf32> to vector<8x128xf32>
    %31 = arith.addf %29, %30 : vector<8x128xf32>
    %c0_14 = arith.constant 0 : index
    %c0_15 = arith.constant 0 : index
    %32 = vector.load %arg3[%c0_14, %c0_15] : memref<8x128xf32, #tpu.memory_space<vmem>>, vector<8x128xf32>
    tpu.vector_store %arg3[%c0_14, %c0_15], %31 {strides = array<i32>} : memref<8x128xf32, #tpu.memory_space<vmem>>, vector<8x128xf32>,
    return
  }
}

</mosaic_0001>

<llo_original>
// kernel: actor_critic_forward.1
$region0: #{actor_critic_forward.1}
  #allocation0 [shape = 'u32[]', space=smem, size = 0x4, offset = 0x4, fixed_abs, tag = 'smem constant byte address 0x4 - core index']
  #allocation1 [shape = 'u32[144,128]{1,0:T(1,128)}', space=vmem, size = 0x12000, scoped, tag = 'internal scratch']
  %s0 = inlined_call_operand.hbm [shape: f32[8,32], index: 0, kind: input, shape index: {}]
  %s1 = inlined_call_operand.hbm [shape: bf16[544,256], index: 1, kind: input, shape index: {}]
  %s2 = inlined_call_operand.hbm [shape: f32[8,256], index: 2, kind: input, shape index: {}]
  %s3 = inlined_call_operand.vmem [shape: f32[8,128], index: 3, kind: output, shape index: {}]
  %s4 = sld [smem:[#allocation0]]
  $region34: #{actor_critic_forward.1} parent=0
    _
  %s6 = ssub.s32 1, %s4
  %s7 = scalar_select 0, %s6, %s4
  $region1: #{actor_critic_forward.1} parent=0
    #allocation2 [shape = 'u8[4096]{0}', space=vmem, size = 0x1000, scoped, tag = 'input window, operand 0, single buffered']
    #allocation3 [shape = 's32[1]{0}', space=sflag, size = 0x4, scoped, tag = 'scoped memory for actor_critic_forward.1']
    #allocation4 [shape = 'u8[278528]{0}', space=vmem, size = 0x44000, scoped, tag = 'input window, operand 1, single buffered']
    #allocation5 [shape = 's32[1]{0}', space=sflag, size = 0x4, scoped, tag = 'scoped memory for actor_critic_forward.1']
    #allocation6 [shape = 'u8[8192]{0}', space=vmem, size = 0x2000, scoped, tag = 'input window, operand 2, single buffered']
    %8 = vsyncpa [#allocation3], 0
    %9 = vsyncpa [#allocation5], 0
    // Predicated region
    $region2: #{actor_critic_forward.1} parent=1 // pred_check
      _
    $region3: #{actor_critic_forward.1} parent=1 // pred_check_branch
      %11 = sbr.rel (0) target = $region5
    $region4: #{actor_critic_forward.1} parent=1 // pred_region
      %s13 = ssub.s32 128, 128
      %14 = vsyncadd [#allocation3], %s13
      %s16 = sshll.u32 [#allocation2], 4
      %s17 = int_to_ptr.vmem [resolvable:$true] %s16
      %19 = dma.hbm_to_vmem [thread:$0]  %s0, 128, %s17, [#allocation3]
    $region5: #{actor_critic_forward.1} parent=1 // pred_fallthru
      _
    // Predicated region
    $region6: #{actor_critic_forward.1} parent=1 // pred_check
      _
    $region7: #{actor_critic_forward.1} parent=1 // pred_check_branch
      %21 = sbr.rel (0) target = $region9
    $region8: #{actor_critic_forward.1} parent=1 // pred_region
      %s23 = ssub.s32 8704, 8704
      %24 = vsyncadd [#allocation5], %s23
      %s25 = sshll.u32 [#allocation4], 4
      %s26 = int_to_ptr.vmem [resolvable:$true] %s25
      %31 = dma.hbm_to_vmem [thread:$0]  %s1, 8704, %s26, [#allocation5], 128, 128, 8
    $region9: #{actor_critic_forward.1} parent=1 // pred_fallthru
      _
    // Predicated region
    $region10: #{actor_critic_forward.1} parent=1 // pred_check
      _
    $region11: #{actor_critic_forward.1} parent=1 // pred_check_branch
      %33 = sbr.rel (0) target = $region13
    $region12: #{actor_critic_forward.1} parent=1 // pred_region
      %s35 = ssub.s32 256, 256
      %36 = vsyncadd [#allocation5], %s35
      %s38 = sshll.u32 [#allocation6], 4
      %s39 = int_to_ptr.vmem [resolvable:$true] %s38
      %41 = dma.hbm_to_vmem [thread:$0]  %s2, 256, %s39, [#allocation5]
    $region13: #{actor_critic_forward.1} parent=1 // pred_fallthru
      _
    // Predicated region
    $region14: #{actor_critic_forward.1} parent=1 // pred_check
      _
    $region15: #{actor_critic_forward.1} parent=1 // pred_check_branch
      %43 = sbr.rel (0) target = $region17
    $region16: #{actor_critic_forward.1} parent=1 // pred_region
      %44 = dma.done [#allocation3], 128
    $region17: #{actor_critic_forward.1} parent=1 // pred_fallthru
      _
    // Predicated region
    $region18: #{actor_critic_forward.1} parent=1 // pred_check
      _
    $region19: #{actor_critic_forward.1} parent=1 // pred_check_branch
      %46 = sbr.rel (0) target = $region21
    $region20: #{actor_critic_forward.1} parent=1 // pred_region
      %47 = dma.done [#allocation5], 8704
    $region21: #{actor_critic_forward.1} parent=1 // pred_fallthru
      _
    // Predicated region
    $region22: #{actor_critic_forward.1} parent=1 // pred_check
      _
    $region23: #{actor_critic_forward.1} parent=1 // pred_check_branch
      %49 = sbr.rel (0) target = $region25
    $region24: #{actor_critic_forward.1} parent=1 // pred_region
      %50 = dma.done [#allocation5], 256
    $region25: #{actor_critic_forward.1} parent=1 // pred_fallthru
      _
    %v52 = vld [vmem:[#allocation6] sm:$0xff]
    %v53 = vld [vmem:[#allocation6 + $0x8] sm:$0xff]
    %v54 = vld [vmem:[#allocation2] sm:$0xff]
    %v55 = vpack.c.bf16 %v54, %v54
    %v56 = vld [vmem:[#allocation4] sm:$0xf]
    %v57 = vld [vmem:[#allocation4 + $0x8] sm:$0xf]
    %v58 = vld [vmem:[#allocation4 + $0x10] sm:$0xf]
    %v59 = vld [vmem:[#allocation4 + $0x18] sm:$0xf]
    %v60 = vlaneseq
    %v61 = vshrl.u32 %v60, 7
    %v62 = vsub.s32 0, %v61
    %v63 = vrot.slane %v52, %v62
    %v68 = vunpack.c.l.b16 %v56
    %v69 = vunpack.c.l.b16 %v57
    %v70 = vunpack.c.l.b16 %v58
    %v71 = vunpack.c.l.b16 %v59
    %v72 = vpack.c.b16 %v69, %v68
    %v73 = vpack.c.b16 %v71, %v70
    %vm76 = vcmask 261120
    %v78 = vsel %vm76, %v55, 0
    %80 = vmatprep.subr.bf16.mxu0 0
    %81 = vmatpush1.bf16.msra.mxu0 %v72
    %82 = vmatprep.subr.bf16.mxu0 0
    %83 = vmatpush1.bf16.msra.mxu0 %v73
    %84 = vmatprep.subr.bf16.mxu0 0
    %85 = vmatpush1.bf16.msra.mxu0 0
    %86 = vmatprep.subr.bf16.mxu0 0
    %87 = vmatpush1.bf16.msra.mxu0 0
    %88 = vmatprep.subr.bf16.mxu0 0
    %89 = vmatpush1.bf16.msra.mxu0 0
    %90 = vmatprep.subr.bf16.mxu0 0
    %91 = vmatpush1.bf16.msra.mxu0 0
    %92 = vmatprep.subr.bf16.mxu0 0
    %93 = vmatpush1.bf16.msra.mxu0 0
    %94 = vmatprep.subr.bf16.mxu0 0
    %95 = vmatpush1.bf16.msra.mxu0 0
    %96 = vmatprep.subr.bf16.mxu0 0
    %97 = vmatpush1.bf16.msra.mxu0 0
    %98 = vmatprep.subr.bf16.mxu0 0
    %99 = vmatpush1.bf16.msra.mxu0 0
    %100 = vmatprep.subr.bf16.mxu0 0
    %101 = vmatpush1.bf16.msra.mxu0 0
    %102 = vmatprep.subr.bf16.mxu0 0
    %103 = vmatpush1.bf16.msra.mxu0 0
    %104 = vmatprep.subr.bf16.mxu0 0
    %105 = vmatpush1.bf16.msra.mxu0 0
    %106 = vmatprep.subr.bf16.mxu0 0
    %107 = vmatpush1.bf16.msra.mxu0 0
    %108 = vmatprep.subr.bf16.mxu0 0
    %109 = vmatpush1.bf16.msra.mxu0 0
    %110 = vmatprep.subr.bf16.mxu0 0
    %111 = vmatpush1.bf16.msra.mxu0 0
    %112 = vmatprep.mubr.bf16.mxu0 0
    %113 = vmatmul.mubr.bf16.gmra.mrb[0].mxu0 %v78
    %v114 = vpop.f32.mrb[0].mxu0
    %v115 = vadd.f32 %v63, %v114
    %v116 = vpop.f32.mrb[0].mxu0
    %v117 = vpop.f32.mrb[0].mxu0
    %v118 = vpop.f32.mrb[0].mxu0
    %119 = vdwg.mxu0
    %v120 = vmax.f32 %v115, 0.0
    %v121 = vpack.c.bf16 %v120, %v120
    %v122 = vld [vmem:[#allocation4 + $0x20] sm:$0xf]
    %v123 = vld [vmem:[#allocation4 + $0x28] sm:$0xf]
    %v124 = vld [vmem:[#allocation4 + $0x30] sm:$0xf]
    %v125 = vld [vmem:[#allocation4 + $0x38] sm:$0xf]
    %v126 = vld [vmem:[#allocation4 + $0x40] sm:$0xf]
    %v127 = vld [vmem:[#allocation4 + $0x48] sm:$0xf]
    %v128 = vld [vmem:[#allocation4 + $0x50] sm:$0xf]
    %v129 = vld [vmem:[#allocation4 + $0x58] sm:$0xf]
    %v130 = vld [vmem:[#allocation4 + $0x60] sm:$0xf]
    %v131 = vld [vmem:[#allocation4 + $0x68] sm:$0xf]
    %v132 = vld [vmem:[#allocation4 + $0x70] sm:$0xf]
    %v133 = vld [vmem:[#allocation4 + $0x78] sm:$0xf]
    %v134 = vld [vmem:[#allocation4 + $0x80] sm:$0xf]
    %v135 = vld [vmem:[#allocation4 + $0x88] sm:$0xf]
    %v136 = vld [vmem:[#allocation4 + $0x90] sm:$0xf]
    %v137 = vld [vmem:[#allocation4 + $0x98] sm:$0xf]
    %v138 = vlaneseq
    %v139 = vshrl.u32 %v138, 7
    %v140 = vsub.s32 1, %v139
    %v141 = vrot.slane %v52, %v140
    %v158 = vunpack.c.l.b16 %v122
    %v159 = vunpack.c.l.b16 %v123
    %v160 = vunpack.c.l.b16 %v124
    %v161 = vunpack.c.l.b16 %v125
    %v162 = vunpack.c.l.b16 %v126
    %v163 = vunpack.c.l.b16 %v127
    %v164 = vunpack.c.l.b16 %v128
    %v165 = vunpack.c.l.b16 %v129
    %v166 = vunpack.c.l.b16 %v130
    %v167 = vunpack.c.l.b16 %v131
    %v168 = vunpack.c.l.b16 %v132
    %v169 = vunpack.c.l.b16 %v133
    %v170 = vunpack.c.l.b16 %v134
    %v171 = vunpack.c.l.b16 %v135
    %v172 = vunpack.c.l.b16 %v136
    %v173 = vunpack.c.l.b16 %v137
    %v174 = vpack.c.b16 %v159, %v158
    %v175 = vpack.c.b16 %v161, %v160
    %v176 = vpack.c.b16 %v163, %v162
    %v177 = vpack.c.b16 %v165, %v164
    %v178 = vpack.c.b16 %v167, %v166
    %v179 = vpack.c.b16 %v169, %v168
    %v180 = vpack.c.b16 %v171, %v170
    %v181 = vpack.c.b16 %v173, %v172
    %190 = vmatprep.subr.bf16.mxu0 0
    %191 = vmatpush1.bf16.msra.mxu0 %v174
    %192 = vmatprep.subr.bf16.mxu0 0
    %193 = vmatpush1.bf16.msra.mxu0 %v175
    %194 = vmatprep.subr.bf16.mxu0 0
    %195 = vmatpush1.bf16.msra.mxu0 %v176
    %196 = vmatprep.subr.bf16.mxu0 0
    %197 = vmatpush1.bf16.msra.mxu0 %v177
    %198 = vmatprep.subr.bf16.mxu0 0
    %199 = vmatpush1.bf16.msra.mxu0 %v178
    %200 = vmatprep.subr.bf16.mxu0 0
    %201 = vmatpush1.bf16.msra.mxu0 %v179
    %202 = vmatprep.subr.bf16.mxu0 0
    %203 = vmatpush1.bf16.msra.mxu0 %v180
    %204 = vmatprep.subr.bf16.mxu0 0
    %205 = vmatpush1.bf16.msra.mxu0 %v181
    %206 = vmatprep.subr.bf16.mxu0 0
    %207 = vmatpush1.bf16.msra.mxu0 0
    %208 = vmatprep.subr.bf16.mxu0 0
    %209 = vmatpush1.bf16.msra.mxu0 0
    %210 = vmatprep.subr.bf16.mxu0 0
    %211 = vmatpush1.bf16.msra.mxu0 0
    %212 = vmatprep.subr.bf16.mxu0 0
    %213 = vmatpush1.bf16.msra.mxu0 0
    %214 = vmatprep.subr.bf16.mxu0 0
    %215 = vmatpush1.bf16.msra.mxu0 0
    %216 = vmatprep.subr.bf16.mxu0 0
    %217 = vmatpush1.bf16.msra.mxu0 0
    %218 = vmatprep.subr.bf16.mxu0 0
    %219 = vmatpush1.bf16.msra.mxu0 0
    %220 = vmatprep.subr.bf16.mxu0 0
    %221 = vmatpush1.bf16.msra.mxu0 0
    %222 = vmatprep.mubr.bf16.mxu0 0
    %223 = vmatmul.mubr.bf16.gmra.mrb[0].mxu0 %v121
    %v224 = vpop.f32.mrb[0].mxu0
    %v225 = vadd.f32 %v141, %v224
    %v226 = vpop.f32.mrb[0].mxu0
    %v227 = vpop.f32.mrb[0].mxu0
    %v228 = vpop.f32.mrb[0].mxu0
    %229 = vdwg.mxu0
    %v230 = vmax.f32 %v225, 0.0
    %v231 = vpack.c.bf16 %v230, %v230
    %v232 = vld [vmem:[#allocation4 + $0xa0] sm:$0xff]
    %v233 = vld [vmem:[#allocation4 + $0xa8] sm:$0xff]
    %v234 = vld [vmem:[#allocation4 + $0xb0] sm:$0xff]
    %v235 = vld [vmem:[#allocation4 + $0xb8] sm:$0xff]
    %v236 = vld [vmem:[#allocation4 + $0xc0] sm:$0xff]
    %v237 = vld [vmem:[#allocation4 + $0xc8] sm:$0xff]
    %v238 = vld [vmem:[#allocation4 + $0xd0] sm:$0xff]
    %v239 = vld [vmem:[#allocation4 + $0xd8] sm:$0xff]
    %v240 = vld [vmem:[#allocation4 + $0xe0] sm:$0xff]
    %v241 = vld [vmem:[#allocation4 + $0xe8] sm:$0xff]
    %v242 = vld [vmem:[#allocation4 + $0xf0] sm:$0xff]
    %v243 = vld [vmem:[#allocation4 + $0xf8] sm:$0xff]
    %v244 = vld [vmem:[#allocation4 + $0x100] sm:$0xff]
    %v245 = vld [vmem:[#allocation4 + $0x108] sm:$0xff]
    %v246 = vld [vmem:[#allocation4 + $0x110] sm:$0xff]
    %v247 = vld [vmem:[#allocation4 + $0x118] sm:$0xff]
    %v248 = vlaneseq
    %v249 = vshrl.u32 %v248, 7
    %v250 = vsub.s32 2, %v249
    %v251 = vrot.slane %v52, %v250
    %v252 = vlaneseq
    %v253 = vshrl.u32 %v252, 7
    %v254 = vsub.s32 2, %v253
    %v255 = vrot.slane %v53, %v254
    %v272 = vunpack.c.l.b16 %v232
    %v273 = vunpack.c.h.b16 %v232
    %v274 = vunpack.c.l.b16 %v233
    %v275 = vunpack.c.h.b16 %v233
    %v276 = vunpack.c.l.b16 %v234
    %v277 = vunpack.c.h.b16 %v234
    %v278 = vunpack.c.l.b16 %v235
    %v279 = vunpack.c.h.b16 %v235
    %v280 = vunpack.c.l.b16 %v236
    %v281 = vunpack.c.h.b16 %v236
    %v282 = vunpack.c.l.b16 %v237
    %v283 = vunpack.c.h.b16 %v237
    %v284 = vunpack.c.l.b16 %v238
    %v285 = vunpack.c.h.b16 %v238
    %v286 = vunpack.c.l.b16 %v239
    %v287 = vunpack.c.h.b16 %v239
    %v288 = vunpack.c.l.b16 %v240
    %v289 = vunpack.c.h.b16 %v240
    %v290 = vunpack.c.l.b16 %v241
    %v291 = vunpack.c.h.b16 %v241
    %v292 = vunpack.c.l.b16 %v242
    %v293 = vunpack.c.h.b16 %v242
    %v294 = vunpack.c.l.b16 %v243
    %v295 = vunpack.c.h.b16 %v243
    %v296 = vunpack.c.l.b16 %v244
    %v297 = vunpack.c.h.b16 %v244
    %v298 = vunpack.c.l.b16 %v245
    %v299 = vunpack.c.h.b16 %v245
    %v300 = vunpack.c.l.b16 %v246
    %v301 = vunpack.c.h.b16 %v246
    %v302 = vunpack.c.l.b16 %v247
    %v303 = vunpack.c.h.b16 %v247
    %v304 = vpack.c.b16 %v274, %v272
    %v305 = vpack.c.b16 %v275, %v273
    %v306 = vpack.c.b16 %v278, %v276
    %v307 = vpack.c.b16 %v279, %v277
    %v308 = vpack.c.b16 %v282, %v280
    %v309 = vpack.c.b16 %v283, %v281
    %v310 = vpack.c.b16 %v286, %v284
    %v311 = vpack.c.b16 %v287, %v285
    %v312 = vpack.c.b16 %v290, %v288
    %v313 = vpack.c.b16 %v291, %v289
    %v314 = vpack.c.b16 %v294, %v292
    %v315 = vpack.c.b16 %v295, %v293
    %v316 = vpack.c.b16 %v298, %v296
    %v317 = vpack.c.b16 %v299, %v297
    %v318 = vpack.c.b16 %v302, %v300
    %v319 = vpack.c.b16 %v303, %v301
    %336 = vmatprep.subr.bf16.mxu0 %v305
    %337 = vmatpush1.bf16.msra.mxu0 %v304
    %338 = vmatprep.subr.bf16.mxu0 %v307
    %339 = vmatpush1.bf16.msra.mxu0 %v306
    %340 = vmatprep.subr.bf16.mxu0 %v309
    %341 = vmatpush1.bf16.msra.mxu0 %v308
    %342 = vmatprep.subr.bf16.mxu0 %v311
    %343 = vmatpush1.bf16.msra.mxu0 %v310
    %344 = vmatprep.subr.bf16.mxu0 %v313
    %345 = vmatpush1.bf16.msra.mxu0 %v312
    %346 = vmatprep.subr.bf16.mxu0 %v315
    %347 = vmatpush1.bf16.msra.mxu0 %v314
    %348 = vmatprep.subr.bf16.mxu0 %v317
    %349 = vmatpush1.bf16.msra.mxu0 %v316
    %350 = vmatprep.subr.bf16.mxu0 %v319
    %351 = vmatpush1.bf16.msra.mxu0 %v318
    %352 = vmatprep.subr.bf16.mxu0 0
    %353 = vmatpush1.bf16.msra.mxu0 0
    %354 = vmatprep.subr.bf16.mxu0 0
    %355 = vmatpush1.bf16.msra.mxu0 0
    %356 = vmatprep.subr.bf16.mxu0 0
    %357 = vmatpush1.bf16.msra.mxu0 0
    %358 = vmatprep.subr.bf16.mxu0 0
    %359 = vmatpush1.bf16.msra.mxu0 0
    %360 = vmatprep.subr.bf16.mxu0 0
    %361 = vmatpush1.bf16.msra.mxu0 0
    %362 = vmatprep.subr.bf16.mxu0 0
    %363 = vmatpush1.bf16.msra.mxu0 0
    %364 = vmatprep.subr.bf16.mxu0 0
    %365 = vmatpush1.bf16.msra.mxu0 0
    %366 = vmatprep.subr.bf16.mxu0 0
    %367 = vmatpush1.bf16.msra.mxu0 0
    %368 = vmatprep.mubr.bf16.mxu0 0
    %369 = vmatmul.mubr.bf16.gmra.mrb[0].mxu0 %v231
    %v370 = vpop.f32.mrb[0].mxu0
    %v371 = vadd.f32 %v251, %v370
    %v372 = vpop.f32.mrb[0].mxu0
    %v373 = vadd.f32 %v255, %v372
    %v374 = vpop.f32.mrb[0].mxu0
    %v375 = vpop.f32.mrb[0].mxu0
    %376 = vdwg.mxu0
    %v377 = vmax.f32 %v371, 0.0
    %v378 = vmax.f32 %v373, 0.0
    %v379 = vpack.c.bf16 %v377, %v377
    %v380 = vpack.c.bf16 %v378, %v378
    %v381 = vld [vmem:[#allocation4 + $0x120] sm:$0xf]
    %v382 = vld [vmem:[#allocation4 + $0x128] sm:$0xf]
    %v383 = vld [vmem:[#allocation4 + $0x130] sm:$0xf]
    %v384 = vld [vmem:[#allocation4 + $0x138] sm:$0xf]
    %v385 = vld [vmem:[#allocation4 + $0x140] sm:$0xf]
    %v386 = vld [vmem:[#allocation4 + $0x148] sm:$0xf]
    %v387 = vld [vmem:[#allocation4 + $0x150] sm:$0xf]
    %v388 = vld [vmem:[#allocation4 + $0x158] sm:$0xf]
    %v389 = vld [vmem:[#allocation4 + $0x160] sm:$0xf]
    %v390 = vld [vmem:[#allocation4 + $0x168] sm:$0xf]
    %v391 = vld [vmem:[#allocation4 + $0x170] sm:$0xf]
    %v392 = vld [vmem:[#allocation4 + $0x178] sm:$0xf]
    %v393 = vld [vmem:[#allocation4 + $0x180] sm:$0xf]
    %v394 = vld [vmem:[#allocation4 + $0x188] sm:$0xf]
    %v395 = vld [vmem:[#allocation4 + $0x190] sm:$0xf]
    %v396 = vld [vmem:[#allocation4 + $0x198] sm:$0xf]
    %v397 = vld [vmem:[#allocation4 + $0x1a0] sm:$0xf]
    %v398 = vld [vmem:[#allocation4 + $0x1a8] sm:$0xf]
    %v399 = vld [vmem:[#allocation4 + $0x1b0] sm:$0xf]
    %v400 = vld [vmem:[#allocation4 + $0x1b8] sm:$0xf]
    %v401 = vld [vmem:[#allocation4 + $0x1c0] sm:$0xf]
    %v402 = vld [vmem:[#allocation4 + $0x1c8] sm:$0xf]
    %v403 = vld [vmem:[#allocation4 + $0x1d0] sm:$0xf]
    %v404 = vld [vmem:[#allocation4 + $0x1d8] sm:$0xf]
    %v405 = vld [vmem:[#allocation4 + $0x1e0] sm:$0xf]
    %v406 = vld [vmem:[#allocation4 + $0x1e8] sm:$0xf]
    %v407 = vld [vmem:[#allocation4 + $0x1f0] sm:$0xf]
    %v408 = vld [vmem:[#allocation4 + $0x1f8] sm:$0xf]
    %v409 = vld [vmem:[#allocation4 + $0x200] sm:$0xf]
    %v410 = vld [vmem:[#allocation4 + $0x208] sm:$0xf]
    %v411 = vld [vmem:[#allocation4 + $0x210] sm:$0xf]
    %v412 = vld [vmem:[#allocation4 + $0x218] sm:$0xf]
    %v413 = vlaneseq
    %v414 = vshrl.u32 %v413, 7
    %v415 = vsub.s32 3, %v414
    %v416 = vrot.slane %v52, %v415
    %v449 = vunpack.c.l.b16 %v381
    %v450 = vunpack.c.l.b16 %v382
    %v451 = vunpack.c.l.b16 %v383
    %v452 = vunpack.c.l.b16 %v384
    %v453 = vunpack.c.l.b16 %v385
    %v454 = vunpack.c.l.b16 %v386
    %v455 = vunpack.c.l.b16 %v387
    %v456 = vunpack.c.l.b16 %v388
    %v457 = vunpack.c.l.b16 %v389
    %v458 = vunpack.c.l.b16 %v390
    %v459 = vunpack.c.l.b16 %v391
    %v460 = vunpack.c.l.b16 %v392
    %v461 = vunpack.c.l.b16 %v393
    %v462 = vunpack.c.l.b16 %v394
    %v463 = vunpack.c.l.b16 %v395
    %v464 = vunpack.c.l.b16 %v396
    %v465 = vunpack.c.l.b16 %v397
    %v466 = vunpack.c.l.b16 %v398
    %v467 = vunpack.c.l.b16 %v399
    %v468 = vunpack.c.l.b16 %v400
    %v469 = vunpack.c.l.b16 %v401
    %v470 = vunpack.c.l.b16 %v402
    %v471 = vunpack.c.l.b16 %v403
    %v472 = vunpack.c.l.b16 %v404
    %v473 = vunpack.c.l.b16 %v405
    %v474 = vunpack.c.l.b16 %v406
    %v475 = vunpack.c.l.b16 %v407
    %v476 = vunpack.c.l.b16 %v408
    %v477 = vunpack.c.l.b16 %v409
    %v478 = vunpack.c.l.b16 %v410
    %v479 = vunpack.c.l.b16 %v411
    %v480 = vunpack.c.l.b16 %v412
    %v481 = vpack.c.b16 %v450, %v449
    %v482 = vpack.c.b16 %v452, %v451
    %v483 = vpack.c.b16 %v454, %v453
    %v484 = vpack.c.b16 %v456, %v455
    %v485 = vpack.c.b16 %v458, %v457
    %v486 = vpack.c.b16 %v460, %v459
    %v487 = vpack.c.b16 %v462, %v461
    %v488 = vpack.c.b16 %v464, %v463
    %v489 = vpack.c.b16 %v466, %v465
    %v490 = vpack.c.b16 %v468, %v467
    %v491 = vpack.c.b16 %v470, %v469
    %v492 = vpack.c.b16 %v472, %v471
    %v493 = vpack.c.b16 %v474, %v473
    %v494 = vpack.c.b16 %v476, %v475
    %v495 = vpack.c.b16 %v478, %v477
    %v496 = vpack.c.b16 %v480, %v479
    %513 = vmatprep.subr.bf16.mxu0 0
    %514 = vmatpush1.bf16.msra.mxu0 %v481
    %515 = vmatprep.subr.bf16.mxu0 0
    %516 = vmatpush1.bf16.msra.mxu0 %v482
    %517 = vmatprep.subr.bf16.mxu0 0
    %518 = vmatpush1.bf16.msra.mxu0 %v483
    %519 = vmatprep.subr.bf16.mxu0 0
    %520 = vmatpush1.bf16.msra.mxu0 %v484
    %521 = vmatprep.subr.bf16.mxu0 0
    %522 = vmatpush1.bf16.msra.mxu0 %v485
    %523 = vmatprep.subr.bf16.mxu0 0
    %524 = vmatpush1.bf16.msra.mxu0 %v486
    %525 = vmatprep.subr.bf16.mxu0 0
    %526 = vmatpush1.bf16.msra.mxu0 %v487
    %527 = vmatprep.subr.bf16.mxu0 0
    %528 = vmatpush1.bf16.msra.mxu0 %v488
    %529 = vmatprep.subr.bf16.mxu0 0
    %530 = vmatpush1.bf16.msra.mxu0 %v489
    %531 = vmatprep.subr.bf16.mxu0 0
    %532 = vmatpush1.bf16.msra.mxu0 %v490
    %533 = vmatprep.subr.bf16.mxu0 0
    %534 = vmatpush1.bf16.msra.mxu0 %v491
    %535 = vmatprep.subr.bf16.mxu0 0
    %536 = vmatpush1.bf16.msra.mxu0 %v492
    %537 = vmatprep.subr.bf16.mxu0 0
    %538 = vmatpush1.bf16.msra.mxu0 %v493
    %539 = vmatprep.subr.bf16.mxu0 0
    %540 = vmatpush1.bf16.msra.mxu0 %v494
    %541 = vmatprep.subr.bf16.mxu0 0
    %542 = vmatpush1.bf16.msra.mxu0 %v495
    %543 = vmatprep.subr.bf16.mxu0 0
    %544 = vmatpush1.bf16.msra.mxu0 %v496
    %545 = vmatprep.mubr.bf16.mxu0 %v380
    %546 = vmatmul.mubr.bf16.gmra.mrb[0].mxu0 %v379
    %v547 = vpop.f32.mrb[0].mxu0
    %v548 = vadd.f32 %v416, %v547
    %v549 = vpop.f32.mrb[0].mxu0
    %v550 = vpop.f32.mrb[0].mxu0
    %v551 = vpop.f32.mrb[0].mxu0
    %552 = vdwg.mxu0
    %553 = vst [vmem:[%s3] sm:$0xff] %v548
    // Predicated region
    $region26: #{actor_critic_forward.1} parent=1 // pred_check
      _
    $region27: #{actor_critic_forward.1} parent=1 // pred_check_branch
      %555 = sbr.rel (0) target = $region29
    $region28: #{actor_critic_forward.1} parent=1 // pred_region
      _
    $region29: #{actor_critic_forward.1} parent=1 // pred_fallthru
      _
    // Predicated region
    $region30: #{actor_critic_forward.1} parent=1 // pred_check
      _
    $region31: #{actor_critic_forward.1} parent=1 // pred_check_branch
      %557 = sbr.rel (0) target = $region33
    $region32: #{actor_critic_forward.1} parent=1 // pred_region
      _
    $region33: #{actor_critic_forward.1} parent=1 // pred_fallthru
      _
    %558 = vsyncpa [#allocation3], 1
    %559 = vsyncpa [#allocation5], 1

</llo_original>
